<compile_context>
chip_gen: v7x
topology: tpu7x:2x2x1
jax: 0.10.0
libtpu: 0.0.40
codegen_flags: <defaults>
</compile_context>

<pallas_src>
import jax
import jax.numpy as jnp
from jax.experimental import pallas as pl
from jax.experimental.pallas import tpu as pltpu


def _round_up(x, m):
    return ((x + m - 1) // m) * m


def _vmem_capacity_bytes():
    try:
        return int(pltpu.get_tpu_info().vmem_capacity_bytes)
    except Exception:
        return 64 << 20  # conservative fallback (v7x per-TC VMEM)


def _vmem_estimate(tm, tk, Dp):
    # Conservatively assume double-buffering on every BlockSpec operand.
    x_b = 2 * tm * Dp * 2                   # x tile (bf16)
    out_b = 2 * tm * Dp * 4                 # output tile (f32, resident accumulator)
    h_b = tm * tk * 4                       # ReLU intermediate (f32 compiler temporary)
    w_b = 2 * (Dp * tk * 2 + tk * Dp * 2)   # W1 + W2 tiles (bf16)
    b_b = 2 * (tk * 4 + Dp * 4)             # biases (f32)
    return x_b + out_b + h_b + w_b + b_b


def _select_tiles(M, Dp, Hp, vmem_budget):
    """Pick (tm, tk_h) for this generation's VMEM budget.

    Priority 1: fully VMEM-resident weights (tk_h = Hp) -> weight HBM traffic is 1x
    regardless of M (biggest win on 128 MiB v5e/v6e; only for small weights on v7x).
    Priority 2: stream hidden tiles, maximizing tm first (weight traffic ~ Mp//tm).
    """
    Mp8 = max(_round_up(M, 8), 8)
    tm_cands = [t for t in (1024, 512, 256, 128) if t <= Mp8] or [Mp8]

    for tm in tm_cands:
        if _vmem_estimate(tm, Hp, Dp) <= vmem_budget:
            return tm, Hp

    tk_cands = [t for t in (2048, 1024, 512, 256, 128)
                if t <= Hp and Hp % t == 0] or [Hp]
    for tm in tm_cands:
        for tk in tk_cands:
            if _vmem_estimate(tm, tk, Dp) <= vmem_budget:
                return tm, tk
    return tm_cands[-1], tk_cands[-1]


def ffn_kernel(x_ref, w1_ref, b1_ref, w2_ref, b2_ref, o_ref):
    # x_ref:  (tm, Dp)    bf16, VMEM-resident across the hidden-tile axis
    # w1_ref: (Dp, tk_h)  bf16, hidden tile k
    # b1_ref: (1, tk_h)   f32
    # w2_ref: (tk_h, Dp)  bf16, hidden tile k
    # b2_ref: (1, Dp)     f32
    # o_ref:  (tm, Dp)    f32 output block; its index is constant over k, so it is
    #                     VMEM-resident and serves as the accumulator directly.
    k = pl.program_id(1)

    @pl.when(k == 0)
    def _():
        # Initialize the accumulator with b2 (removes a separate final add).
        o_ref[...] = jnp.broadcast_to(b2_ref[...], o_ref.shape)

    # linear1 (this hidden tile) + bias + ReLU, f32 accumulation on the MXU.
    h = jnp.dot(x_ref[...], w1_ref[...], preferred_element_type=jnp.float32)
    h = jnp.maximum(h + b1_ref[...], 0.0)

    # linear2: accumulate this hidden tile's contribution into the resident f32 output.
    o_ref[...] += jnp.dot(h.astype(jnp.bfloat16), w2_ref[...],
                          preferred_element_type=jnp.float32)


def prepare_params(w1, b1, w2, b2):
    """One-time lane-dense padding + bf16 cast of the FFN weights (hoisted out of the
    per-call path so repeated calls do not re-pay the HBM pad/cast passes)."""
    d_model, hidden = w1.shape
    Dp = _round_up(d_model, 128)
    Hp = _round_up(hidden, 128)

    if d_model == Dp and hidden == Hp:
        w1p = w1.astype(jnp.bfloat16)
        w2p = w2.astype(jnp.bfloat16)
        b1p = b1.reshape(1, hidden).astype(jnp.float32)
        b2p = b2.reshape(1, d_model).astype(jnp.float32)
    else:
        w1p = jnp.zeros((Dp, Hp), jnp.bfloat16).at[:d_model, :hidden].set(
            w1.astype(jnp.bfloat16))
        w2p = jnp.zeros((Hp, Dp), jnp.bfloat16).at[:hidden, :d_model].set(
            w2.astype(jnp.bfloat16))
        b1p = jnp.zeros((1, Hp), jnp.float32).at[:, :hidden].set(
            b1.reshape(1, hidden).astype(jnp.float32))
        b2p = jnp.zeros((1, Dp), jnp.float32).at[:, :d_model].set(
            b2.reshape(1, d_model).astype(jnp.float32))

    return dict(w1=w1p, b1=b1p, w2=w2p, b2=b2p,
                d_model=d_model, hidden=hidden, Dp=Dp, Hp=Hp)


def feed_forward(x, params, *, tm=None, tk_h=None):
    """x: (batch, seq, d_model). params: output of prepare_params()."""
    d_model, hidden = params["d_model"], params["hidden"]
    Dp, Hp = params["Dp"], params["Hp"]
    w1p, b1p, w2p, b2p = params["w1"], params["b1"], params["w2"], params["b2"]

    batch, seq, dm = x.shape
    assert dm == d_model
    M = batch * seq

    vmem_cap = _vmem_capacity_bytes()
    vmem_budget = int(vmem_cap * 0.78)          # leave headroom for Mosaic scratch

    auto_tm, auto_tk = _select_tiles(M, Dp, Hp, vmem_budget)
    tm = auto_tm if tm is None else min(tm, _round_up(M, 8))
    tk_h = auto_tk if tk_h is None else tk_h
    assert Hp % tk_h == 0, "tk_h must divide the padded hidden dim"

    Mp = _round_up(M, tm)

    # Pad / cast x only when needed (zero padding is exact: relu of padded rows feeds
    # zero W2 rows / gets sliced off; padded feature columns are exactly zero).
    x2d = x.reshape(M, d_model)
    no_pad = (Mp == M) and (Dp == d_model)
    if no_pad:
        x2d = x2d.astype(jnp.bfloat16)
    else:
        x2d = jnp.zeros((Mp, Dp), jnp.bfloat16).at[:M, :d_model].set(
            x2d.astype(jnp.bfloat16))

    grid = (Mp // tm, Hp // tk_h)
    resident = (tk_h == Hp)
    weight_passes = 1 if resident else (Mp // tm)

    est = _vmem_estimate(tm, tk_h, Dp)
    vmem_limit = int(min(vmem_cap * 0.9, max(est + (est >> 1), 16 << 20)))

    cost = pl.CostEstimate(
        flops=int(4 * Mp * Dp * Hp),                     # two matmuls
        transcendentals=0,
        bytes_accessed=int(Mp * Dp * 2                   # x in (bf16)
                           + Mp * Dp * 4                 # out (f32)
                           + weight_passes * (2 * Dp * Hp * 2)  # W1 + W2 (bf16)
                           + Hp * 4 + Dp * 4),           # biases
    )

    out2d = pl.pallas_call(
        ffn_kernel,
        out_shape=jax.ShapeDtypeStruct((Mp, Dp), jnp.float32),
        grid_spec=pltpu.PrefetchScalarGridSpec(
            num_scalar_prefetch=0,
            grid=grid,
            in_specs=[
                pl.BlockSpec((tm, Dp), lambda i, k: (i, 0)),    # x tile (resident over k)
                pl.BlockSpec((Dp, tk_h), lambda i, k: (0, k)),  # W1 hidden tile
                pl.BlockSpec((1, tk_h), lambda i, k: (0, k)),   # b1 hidden tile
                pl.BlockSpec((tk_h, Dp), lambda i, k: (k, 0)),  # W2 hidden tile
                pl.BlockSpec((1, Dp), lambda i, k: (0, 0)),     # b2
            ],
            out_specs=pl.BlockSpec((tm, Dp), lambda i, k: (i, 0)),
        ),
        compiler_params=pltpu.CompilerParams(
            dimension_semantics=("parallel", "arbitrary"),
            vmem_limit_bytes=vmem_limit),
        cost_estimate=cost,
    )(x2d, w1p, b1p, w2p, b2p)

    if no_pad:
        out = out2d.reshape(batch, seq, d_model)
    else:
        out = out2d[:M, :d_model].reshape(batch, seq, d_model)
    return out.astype(x.dtype)


def init_params(key, d_model, r_ff):
    """Deterministic init matching the PyTorch reset_parameters()."""
    hidden = d_model * r_ff
    k1, k2 = jax.random.split(key)

    # linear1.weight: kaiming_normal_(nonlinearity='relu'), fan_in = d_model.
    # PyTorch weight is (hidden, d_model); we store the transpose (d_model, hidden).
    std1 = (2.0 / d_model) ** 0.5
    w1 = jax.random.normal(k1, (d_model, hidden), dtype=jnp.float32) * std1
    b1 = jnp.zeros((1, hidden), dtype=jnp.float32)

    # linear2.weight: xavier_uniform_, fan_in = hidden, fan_out = d_model.
    bound2 = (6.0 / (hidden + d_model)) ** 0.5
    w2 = jax.random.uniform(k2, (hidden, d_model), dtype=jnp.float32,
                            minval=-bound2, maxval=bound2)
    b2 = jnp.zeros((1, d_model), dtype=jnp.float32)
    return w1, b1, w2, b2


if __name__ == "__main__":
    key = jax.random.PRNGKey(0)
    kx, kp = jax.random.split(key)

    batch, seq, d_model, r_ff = 2, 128, 64, 4   # hidden = 256, M = 256
    x = jax.random.normal(kx, (batch, seq, d_model), dtype=jnp.float32)
    w1, b1, w2, b2 = init_params(kp, d_model, r_ff)

    params = prepare_params(w1, b1, w2, b2)      # one-time pad + bf16 cast
    out = feed_forward(x, params)                # generation-aware tiles / VMEM limit
    out = jax.block_until_ready(out)

    # Pure-JAX f32 reference (eval-mode dropout = identity). bf16 MXU operands with
    # f32 accumulation -> looser tolerance than a pure-f32 kernel.
    ref = jnp.maximum(x.reshape(-1, d_model) @ w1 + b1, 0.0) @ w2 + b2
    ref = ref.reshape(batch, seq, d_model)
    assert out.shape == ref.shape
    assert jnp.allclose(out, ref, atol=2e-2, rtol=2e-2), (
        "mismatch vs reference: max abs diff "
        f"{float(jnp.max(jnp.abs(out - ref)))}")

    print("KERNEL_OK")
</pallas_src>

<mosaic_0001>
module attributes {stable_mosaic.version = 11 : i64} {
  func.func @ffn_kernel(%arg0: i32, %arg1: i32, %arg2: memref<256x128xbf16, #tpu.memory_space<vmem>>, %arg3: memref<128x256xbf16, #tpu.memory_space<vmem>>, %arg4: memref<1x256xf32, #tpu.memory_space<vmem>>, %arg5: memref<256x128xbf16, #tpu.memory_space<vmem>>, %arg6: memref<1x128xf32, #tpu.memory_space<vmem>>, %arg7: memref<256x128xf32, #tpu.memory_space<vmem>>) attributes {dimension_semantics = [#tpu.dimension_semantics<parallel>, #tpu.dimension_semantics<arbitrary>], iteration_bounds = array<i64: 1, 1>, scalar_prefetch = 0 : i64, scratch_operands = 0 : i64, tpu.core_type = #tpu.core_type<tc>, window_params = [{transform_indices = @transform_0, window_bounds = array<i64: 256, 128>}, {transform_indices = @transform_1, window_bounds = array<i64: 128, 256>}, {transform_indices = @transform_2, window_bounds = array<i64: 1, 256>}, {transform_indices = @transform_3, window_bounds = array<i64: 256, 128>}, {pipeline_mode = #tpu.pipeline_mode<synchronous>, transform_indices = @transform_4, window_bounds = array<i64: 1, 128>}, {transform_indices = @transform_5, window_bounds = array<i64: 256, 128>}]} {
    %c0_i32 = arith.constant 0 : i32
    %0 = arith.cmpi eq, %arg1, %c0_i32 : i32
    %1 = arith.extui %0 : i1 to i32
    %c0_i32_0 = arith.constant 0 : i32
    %2 = arith.cmpi ne, %1, %c0_i32_0 : i32
    scf.if %2 {
      %c0_14 = arith.constant 0 : index
      %c0_15 = arith.constant 0 : index
      %17 = vector.load %arg6[%c0_14, %c0_15] : memref<1x128xf32, #tpu.memory_space<vmem>>, vector<1x128xf32>
      %18 = vector.shape_cast %17 : vector<1x128xf32> to vector<1x128xf32>
      %19 = vector.broadcast %18 : vector<1x128xf32> to vector<256x128xf32>
      %c0_16 = arith.constant 0 : index
      %c0_17 = arith.constant 0 : index
      %20 = vector.load %arg7[%c0_16, %c0_17] : memref<256x128xf32, #tpu.memory_space<vmem>>, vector<256x128xf32>
      tpu.vector_store %arg7[%c0_16, %c0_17], %19 {strides = array<i32>} : memref<256x128xf32, #tpu.memory_space<vmem>>, vector<256x128xf32>,
    } else {
    }
    %c0 = arith.constant 0 : index
    %c0_1 = arith.constant 0 : index
    %3 = vector.load %arg2[%c0, %c0_1] : memref<256x128xbf16, #tpu.memory_space<vmem>>, vector<256x128xbf16>
    %c0_2 = arith.constant 0 : index
    %c0_3 = arith.constant 0 : index
    %4 = vector.load %arg3[%c0_2, %c0_3] : memref<128x256xbf16, #tpu.memory_space<vmem>>, vector<128x256xbf16>
    %cst = arith.constant dense<0.000000e+00> : vector<256x256xf32>
    %5 = tpu.matmul %3, %4, %cst {dimension_numbers = #tpu.dot_dimension_numbers<[1], [0], [0], [1], [0, 0, 1, 1], [], []>} : vector<256x128xbf16>, vector<128x256xbf16>, vector<256x256xf32> -> vector<256x256xf32>
    %c0_4 = arith.constant 0 : index
    %c0_5 = arith.constant 0 : index
    %6 = vector.load %arg4[%c0_4, %c0_5] : memref<1x256xf32, #tpu.memory_space<vmem>>, vector<1x256xf32>
    %7 = vector.broadcast %6 : vector<1x256xf32> to vector<256x256xf32>
    %8 = arith.addf %5, %7 : vector<256x256xf32>
    %cst_6 = arith.constant 0.000000e+00 : f32
    %9 = vector.broadcast %cst_6 : f32 to vector<256x256xf32>
    %10 = arith.maximumf %8, %9 : vector<256x256xf32>
    %c0_7 = arith.constant 0 : index
    %c0_8 = arith.constant 0 : index
    %11 = vector.load %arg7[%c0_7, %c0_8] : memref<256x128xf32, #tpu.memory_space<vmem>>, vector<256x128xf32>
    %12 = arith.truncf %10 : vector<256x256xf32> to vector<256x256xbf16>
    %c0_9 = arith.constant 0 : index
    %c0_10 = arith.constant 0 : index
    %13 = vector.load %arg5[%c0_9, %c0_10] : memref<256x128xbf16, #tpu.memory_space<vmem>>, vector<256x128xbf16>
    %cst_11 = arith.constant dense<0.000000e+00> : vector<256x128xf32>
    %14 = tpu.matmul %12, %13, %cst_11 {dimension_numbers = #tpu.dot_dimension_numbers<[1], [0], [0], [1], [0, 0, 1, 1], [], []>} : vector<256x256xbf16>, vector<256x128xbf16>, vector<256x128xf32> -> vector<256x128xf32>
    %15 = arith.addf %11, %14 : vector<256x128xf32>
    %c0_12 = arith.constant 0 : index
    %c0_13 = arith.constant 0 : index
    %16 = vector.load %arg7[%c0_12, %c0_13] : memref<256x128xf32, #tpu.memory_space<vmem>>, vector<256x128xf32>
    tpu.vector_store %arg7[%c0_12, %c0_13], %15 {strides = array<i32>} : memref<256x128xf32, #tpu.memory_space<vmem>>, vector<256x128xf32>,
    return
  }
  func.func @transform_0(%arg0: i32, %arg1: i32) -> (i32, i32) {
    %c0_i32 = arith.constant 0 : i32
    %c0_i32_0 = arith.constant 0 : i32
    return %arg0, %c0_i32 : i32, i32
  }
  func.func @transform_1(%arg0: i32, %arg1: i32) -> (i32, i32) {
    %c0_i32 = arith.constant 0 : i32
    %c0_i32_0 = arith.constant 0 : i32
    return %c0_i32, %arg1 : i32, i32
  }
  func.func @transform_2(%arg0: i32, %arg1: i32) -> (i32, i32) {
    %c0_i32 = arith.constant 0 : i32
    %c0_i32_0 = arith.constant 0 : i32
    return %c0_i32, %arg1 : i32, i32
  }
  func.func @transform_3(%arg0: i32, %arg1: i32) -> (i32, i32) {
    %c0_i32 = arith.constant 0 : i32
    %c0_i32_0 = arith.constant 0 : i32
    return %arg1, %c0_i32 : i32, i32
  }
  func.func @transform_4(%arg0: i32, %arg1: i32) -> (i32, i32) {
    %c0_i32 = arith.constant 0 : i32
    %c0_i32_0 = arith.constant 0 : i32
    %c0_i32_1 = arith.constant 0 : i32
    return %c0_i32, %c0_i32_0 : i32, i32
  }
  func.func @transform_5(%arg0: i32, %arg1: i32) -> (i32, i32) {
    %c0_i32 = arith.constant 0 : i32
    %c0_i32_0 = arith.constant 0 : i32
    return %arg0, %c0_i32 : i32, i32
  }
}

</mosaic_0001>

<llo_original>
// kernel: tpu_custom_call.1
$region0: #{tpu_custom_call.1}
  #allocation0 [shape = 'u32[]', space=smem, size = 0x4, offset = 0x4, fixed_abs, tag = 'smem constant byte address 0x4 - core index']
  #allocation1 [shape = 'u32[144,128]{1,0:T(1,128)}', space=vmem, size = 0x12000, scoped, tag = 'internal scratch']
  %s0 = inlined_call_operand.hbm [shape: bf16[256,128], index: 0, kind: input, shape index: {}]
  %s1 = inlined_call_operand.hbm [shape: bf16[128,256], index: 1, kind: input, shape index: {}]
  %s2 = inlined_call_operand.vmem [shape: f32[1,256], index: 2, kind: input, shape index: {}]
  %s3 = inlined_call_operand.hbm [shape: bf16[256,128], index: 3, kind: input, shape index: {}]
  %s4 = inlined_call_operand.vmem [shape: f32[1,128], index: 4, kind: input, shape index: {}]
  %s5 = inlined_call_operand.hbm [shape: f32[256,128], index: 5, kind: output, shape index: {}]
  %s6 = sld [smem:[#allocation0]]
  $region46: #{tpu_custom_call.1} parent=0
    _
  %s8 = ssub.s32 1, %s6
  %s9 = scalar_select 0, %s8, %s6
  $region1: #{tpu_custom_call.1} parent=0
    #allocation2 [shape = 'u8[65536]{0}', space=vmem, size = 0x10000, scoped, tag = 'input window, operand 0, single buffered']
    #allocation3 [shape = 's32[1]{0}', space=sflag, size = 0x4, scoped, tag = 'scoped memory for tpu_custom_call.1']
    #allocation4 [shape = 's32[1]{0}', space=sflag, size = 0x4, scoped, tag = 'scoped memory for tpu_custom_call.1']
    #allocation5 [shape = 'u8[65536]{0}', space=vmem, size = 0x10000, scoped, tag = 'input window, operand 1, single buffered']
    #allocation6 [shape = 's32[1]{0}', space=sflag, size = 0x4, scoped, tag = 'scoped memory for tpu_custom_call.1']
    #allocation7 [shape = 'u8[65536]{0}', space=vmem, size = 0x10000, scoped, tag = 'input window, operand 3, single buffered']
    #allocation8 [shape = 'u8[131072]{0}', space=vmem, size = 0x20000, scoped, tag = 'output window, operand 0, single buffered']
    %10 = vsyncpa [#allocation3], 0
    %11 = vsyncpa [#allocation6], 0
    %12 = vsyncpa [#allocation4], 0
    // Predicated region
    $region2: #{tpu_custom_call.1} parent=1 // pred_check
      _
    $region3: #{tpu_custom_call.1} parent=1 // pred_check_branch
      %14 = sbr.rel (0) target = $region5
    $region4: #{tpu_custom_call.1} parent=1 // pred_region
      %s16 = ssub.s32 2048, 2048
      %17 = vsyncadd [#allocation3], %s16
      %s18 = sshll.u32 [#allocation2], 4
      %s19 = int_to_ptr.vmem [resolvable:$true] %s18
      %24 = dma.hbm_to_vmem [thread:$0]  %s0, 2048, %s19, [#allocation3], 64, 64, 4
    $region5: #{tpu_custom_call.1} parent=1 // pred_fallthru
      _
    // Predicated region
    $region6: #{tpu_custom_call.1} parent=1 // pred_check
      _
    $region7: #{tpu_custom_call.1} parent=1 // pred_check_branch
      %26 = sbr.rel (0) target = $region9
    $region8: #{tpu_custom_call.1} parent=1 // pred_region
      %s28 = ssub.s32 2048, 2048
      %29 = vsyncadd [#allocation6], %s28
      %s30 = sshll.u32 [#allocation5], 4
      %s31 = int_to_ptr.vmem [resolvable:$true] %s30
      %36 = dma.hbm_to_vmem [thread:$0]  %s1, 2048, %s31, [#allocation6], 128, 128, 8
    $region9: #{tpu_custom_call.1} parent=1 // pred_fallthru
      _
    // Predicated region
    $region10: #{tpu_custom_call.1} parent=1 // pred_check
      _
    $region11: #{tpu_custom_call.1} parent=1 // pred_check_branch
      %38 = sbr.rel (0) target = $region13
    $region12: #{tpu_custom_call.1} parent=1 // pred_region
      _
    $region13: #{tpu_custom_call.1} parent=1 // pred_fallthru
      _
    // Predicated region
    $region14: #{tpu_custom_call.1} parent=1 // pred_check
      _
    $region15: #{tpu_custom_call.1} parent=1 // pred_check_branch
      %40 = sbr.rel (0) target = $region17
    $region16: #{tpu_custom_call.1} parent=1 // pred_region
      %s42 = ssub.s32 2048, 2048
      %43 = vsyncadd [#allocation6], %s42
      %s44 = sshll.u32 [#allocation7], 4
      %s45 = int_to_ptr.vmem [resolvable:$true] %s44
      %50 = dma.hbm_to_vmem [thread:$0]  %s3, 2048, %s45, [#allocation6], 64, 64, 4
    $region17: #{tpu_custom_call.1} parent=1 // pred_fallthru
      _
    // Predicated region
    $region18: #{tpu_custom_call.1} parent=1 // pred_check
      _
    $region19: #{tpu_custom_call.1} parent=1 // pred_check_branch
      %52 = sbr.rel (0) target = $region21
    $region20: #{tpu_custom_call.1} parent=1 // pred_region
      _
    $region21: #{tpu_custom_call.1} parent=1 // pred_fallthru
      _
    // Predicated region
    $region22: #{tpu_custom_call.1} parent=1 // pred_check
      _
    $region23: #{tpu_custom_call.1} parent=1 // pred_check_branch
      %54 = sbr.rel (0) target = $region25
    $region24: #{tpu_custom_call.1} parent=1 // pred_region
      %55 = dma.done [#allocation3], 2048
    $region25: #{tpu_custom_call.1} parent=1 // pred_fallthru
      _
    // Predicated region
    $region26: #{tpu_custom_call.1} parent=1 // pred_check
      _
    $region27: #{tpu_custom_call.1} parent=1 // pred_check_branch
      %57 = sbr.rel (0) target = $region29
    $region28: #{tpu_custom_call.1} parent=1 // pred_region
      %58 = dma.done [#allocation6], 2048
    $region29: #{tpu_custom_call.1} parent=1 // pred_fallthru
      _
    // Predicated region
    $region30: #{tpu_custom_call.1} parent=1 // pred_check
      _
    $region31: #{tpu_custom_call.1} parent=1 // pred_check_branch
      %60 = sbr.rel (0) target = $region33
    $region32: #{tpu_custom_call.1} parent=1 // pred_region
      %61 = dma.done [#allocation6], 2048
    $region33: #{tpu_custom_call.1} parent=1 // pred_fallthru
      _
    %p63 = scmp.eq.s32.totalorder 0, 0
    // Predicated region
    $region34: #{tpu_custom_call.1} parent=1 // pred_check
      %p64 = pneg %p63
    $region35: #{tpu_custom_call.1} parent=1 // pred_check_branch
      %66 = sbr.rel (%p64) target = $region37
    $region36: #{tpu_custom_call.1} parent=1 // pred_region
      %v67 = vld [vmem:[%s4] sm:$0x1]
      %v69 = vlaneseq
      %v70 = vshrl.u32 %v69, 7
      %v71 = vsub.s32 0, %v70
      %v72 = vrot.slane %v67, %v71
      %74 = vst [vmem:[#allocation8] sm:$0xff] %v72
      %75 = vst [vmem:[#allocation8 + $0x8] sm:$0xff] %v72
      %76 = vst [vmem:[#allocation8 + $0x10] sm:$0xff] %v72
      %77 = vst [vmem:[#allocation8 + $0x18] sm:$0xff] %v72
      %78 = vst [vmem:[#allocation8 + $0x20] sm:$0xff] %v72
      %79 = vst [vmem:[#allocation8 + $0x28] sm:$0xff] %v72
      %80 = vst [vmem:[#allocation8 + $0x30] sm:$0xff] %v72
      %81 = vst [vmem:[#allocation8 + $0x38] sm:$0xff] %v72
      %82 = vst [vmem:[#allocation8 + $0x40] sm:$0xff] %v72
      %83 = vst [vmem:[#allocation8 + $0x48] sm:$0xff] %v72
      %84 = vst [vmem:[#allocation8 + $0x50] sm:$0xff] %v72
      %85 = vst [vmem:[#allocation8 + $0x58] sm:$0xff] %v72
      %86 = vst [vmem:[#allocation8 + $0x60] sm:$0xff] %v72
      %87 = vst [vmem:[#allocation8 + $0x68] sm:$0xff] %v72
      %88 = vst [vmem:[#allocation8 + $0x70] sm:$0xff] %v72
      %89 = vst [vmem:[#allocation8 + $0x78] sm:$0xff] %v72
      %90 = vst [vmem:[#allocation8 + $0x80] sm:$0xff] %v72
      %91 = vst [vmem:[#allocation8 + $0x88] sm:$0xff] %v72
      %92 = vst [vmem:[#allocation8 + $0x90] sm:$0xff] %v72
      %93 = vst [vmem:[#allocation8 + $0x98] sm:$0xff] %v72
      %94 = vst [vmem:[#allocation8 + $0xa0] sm:$0xff] %v72
      %95 = vst [vmem:[#allocation8 + $0xa8] sm:$0xff] %v72
      %96 = vst [vmem:[#allocation8 + $0xb0] sm:$0xff] %v72
      %97 = vst [vmem:[#allocation8 + $0xb8] sm:$0xff] %v72
      %98 = vst [vmem:[#allocation8 + $0xc0] sm:$0xff] %v72
      %99 = vst [vmem:[#allocation8 + $0xc8] sm:$0xff] %v72
      %100 = vst [vmem:[#allocation8 + $0xd0] sm:$0xff] %v72
      %101 = vst [vmem:[#allocation8 + $0xd8] sm:$0xff] %v72
      %102 = vst [vmem:[#allocation8 + $0xe0] sm:$0xff] %v72
      %103 = vst [vmem:[#allocation8 + $0xe8] sm:$0xff] %v72
      %104 = vst [vmem:[#allocation8 + $0xf0] sm:$0xff] %v72
      %105 = vst [vmem:[#allocation8 + $0xf8] sm:$0xff] %v72
    $region37: #{tpu_custom_call.1} parent=1 // pred_fallthru
      _
    %v106 = vld [vmem:[#allocation2] sm:$0xf]
    %v107 = vld [vmem:[#allocation2 + $0x4] sm:$0xf]
    %v108 = vld [vmem:[#allocation2 + $0x8] sm:$0xf]
    %v109 = vld [vmem:[#allocation2 + $0xc] sm:$0xf]
    %v110 = vld [vmem:[#allocation2 + $0x10] sm:$0xf]
    %v111 = vld [vmem:[#allocation2 + $0x14] sm:$0xf]
    %v112 = vld [vmem:[#allocation2 + $0x18] sm:$0xf]
    %v113 = vld [vmem:[#allocation2 + $0x1c] sm:$0xf]
    %v114 = vld [vmem:[#allocation2 + $0x20] sm:$0xf]
    %v115 = vld [vmem:[#allocation2 + $0x24] sm:$0xf]
    %v116 = vld [vmem:[#allocation2 + $0x28] sm:$0xf]
    %v117 = vld [vmem:[#allocation2 + $0x2c] sm:$0xf]
    %v118 = vld [vmem:[#allocation2 + $0x30] sm:$0xf]
    %v119 = vld [vmem:[#allocation2 + $0x34] sm:$0xf]
    %v120 = vld [vmem:[#allocation2 + $0x38] sm:$0xf]
    %v121 = vld [vmem:[#allocation2 + $0x3c] sm:$0xf]
    %v122 = vld [vmem:[#allocation2 + $0x40] sm:$0xf]
    %v123 = vld [vmem:[#allocation2 + $0x44] sm:$0xf]
    %v124 = vld [vmem:[#allocation2 + $0x48] sm:$0xf]
    %v125 = vld [vmem:[#allocation2 + $0x4c] sm:$0xf]
    %v126 = vld [vmem:[#allocation2 + $0x50] sm:$0xf]
    %v127 = vld [vmem:[#allocation2 + $0x54] sm:$0xf]
    %v128 = vld [vmem:[#allocation2 + $0x58] sm:$0xf]
    %v129 = vld [vmem:[#allocation2 + $0x5c] sm:$0xf]
    %v130 = vld [vmem:[#allocation2 + $0x60] sm:$0xf]
    %v131 = vld [vmem:[#allocation2 + $0x64] sm:$0xf]
    %v132 = vld [vmem:[#allocation2 + $0x68] sm:$0xf]
    %v133 = vld [vmem:[#allocation2 + $0x6c] sm:$0xf]
    %v134 = vld [vmem:[#allocation2 + $0x70] sm:$0xf]
    %v135 = vld [vmem:[#allocation2 + $0x74] sm:$0xf]
    %v136 = vld [vmem:[#allocation2 + $0x78] sm:$0xf]
    %v137 = vld [vmem:[#allocation2 + $0x7c] sm:$0xf]
    %v138 = vld [vmem:[#allocation5] sm:$0xff]
    %v139 = vld [vmem:[#allocation5 + $0x8] sm:$0xff]
    %v140 = vld [vmem:[#allocation5 + $0x10] sm:$0xff]
    %v141 = vld [vmem:[#allocation5 + $0x18] sm:$0xff]
    %v142 = vld [vmem:[#allocation5 + $0x20] sm:$0xff]
    %v143 = vld [vmem:[#allocation5 + $0x28] sm:$0xff]
    %v144 = vld [vmem:[#allocation5 + $0x30] sm:$0xff]
    %v145 = vld [vmem:[#allocation5 + $0x38] sm:$0xff]
    %v146 = vld [vmem:[#allocation5 + $0x40] sm:$0xff]
    %v147 = vld [vmem:[#allocation5 + $0x48] sm:$0xff]
    %v148 = vld [vmem:[#allocation5 + $0x50] sm:$0xff]
    %v149 = vld [vmem:[#allocation5 + $0x58] sm:$0xff]
    %v150 = vld [vmem:[#allocation5 + $0x60] sm:$0xff]
    %v151 = vld [vmem:[#allocation5 + $0x68] sm:$0xff]
    %v152 = vld [vmem:[#allocation5 + $0x70] sm:$0xff]
    %v153 = vld [vmem:[#allocation5 + $0x78] sm:$0xff]
    %v154 = vld [vmem:[%s2] sm:$0x3]
    %v156 = vlaneseq
    %v157 = vshrl.u32 %v156, 7
    %v158 = vsub.s32 0, %v157
    %v159 = vrot.slane %v154, %v158
    %v160 = vlaneseq
    %v161 = vshrl.u32 %v160, 7
    %v162 = vsub.s32 1, %v161
    %v163 = vrot.slane %v154, %v162
    %v198 = vunpack.c.l.b16 %v106
    %v199 = vunpack.c.l.b16 %v107
    %v200 = vunpack.c.l.b16 %v108
    %v201 = vunpack.c.l.b16 %v109
    %v202 = vunpack.c.l.b16 %v110
    %v203 = vunpack.c.l.b16 %v111
    %v204 = vunpack.c.l.b16 %v112
    %v205 = vunpack.c.l.b16 %v113
    %v206 = vunpack.c.l.b16 %v114
    %v207 = vunpack.c.l.b16 %v115
    %v208 = vunpack.c.l.b16 %v116
    %v209 = vunpack.c.l.b16 %v117
    %v210 = vunpack.c.l.b16 %v118
    %v211 = vunpack.c.l.b16 %v119
    %v212 = vunpack.c.l.b16 %v120
    %v213 = vunpack.c.l.b16 %v121
    %v214 = vunpack.c.l.b16 %v122
    %v215 = vunpack.c.l.b16 %v123
    %v216 = vunpack.c.l.b16 %v124
    %v217 = vunpack.c.l.b16 %v125
    %v218 = vunpack.c.l.b16 %v126
    %v219 = vunpack.c.l.b16 %v127
    %v220 = vunpack.c.l.b16 %v128
    %v221 = vunpack.c.l.b16 %v129
    %v222 = vunpack.c.l.b16 %v130
    %v223 = vunpack.c.l.b16 %v131
    %v224 = vunpack.c.l.b16 %v132
    %v225 = vunpack.c.l.b16 %v133
    %v226 = vunpack.c.l.b16 %v134
    %v227 = vunpack.c.l.b16 %v135
    %v228 = vunpack.c.l.b16 %v136
    %v229 = vunpack.c.l.b16 %v137
    %v230 = vpack.c.b16 %v199, %v198
    %v231 = vpack.c.b16 %v201, %v200
    %v232 = vpack.c.b16 %v203, %v202
    %v233 = vpack.c.b16 %v205, %v204
    %v234 = vpack.c.b16 %v207, %v206
    %v235 = vpack.c.b16 %v209, %v208
    %v236 = vpack.c.b16 %v211, %v210
    %v237 = vpack.c.b16 %v213, %v212
    %v238 = vpack.c.b16 %v215, %v214
    %v239 = vpack.c.b16 %v217, %v216
    %v240 = vpack.c.b16 %v219, %v218
    %v241 = vpack.c.b16 %v221, %v220
    %v242 = vpack.c.b16 %v223, %v222
    %v243 = vpack.c.b16 %v225, %v224
    %v244 = vpack.c.b16 %v227, %v226
    %v245 = vpack.c.b16 %v229, %v228
    %v278 = vunpack.c.l.b16 %v138
    %v279 = vunpack.c.h.b16 %v138
    %v280 = vunpack.c.l.b16 %v139
    %v281 = vunpack.c.h.b16 %v139
    %v282 = vunpack.c.l.b16 %v140
    %v283 = vunpack.c.h.b16 %v140
    %v284 = vunpack.c.l.b16 %v141
    %v285 = vunpack.c.h.b16 %v141
    %v286 = vunpack.c.l.b16 %v142
    %v287 = vunpack.c.h.b16 %v142
    %v288 = vunpack.c.l.b16 %v143
    %v289 = vunpack.c.h.b16 %v143
    %v290 = vunpack.c.l.b16 %v144
    %v291 = vunpack.c.h.b16 %v144
    %v292 = vunpack.c.l.b16 %v145
    %v293 = vunpack.c.h.b16 %v145
    %v294 = vunpack.c.l.b16 %v146
    %v295 = vunpack.c.h.b16 %v146
    %v296 = vunpack.c.l.b16 %v147
    %v297 = vunpack.c.h.b16 %v147
    %v298 = vunpack.c.l.b16 %v148
    %v299 = vunpack.c.h.b16 %v148
    %v300 = vunpack.c.l.b16 %v149
    %v301 = vunpack.c.h.b16 %v149
    %v302 = vunpack.c.l.b16 %v150
    %v303 = vunpack.c.h.b16 %v150
    %v304 = vunpack.c.l.b16 %v151
    %v305 = vunpack.c.h.b16 %v151
    %v306 = vunpack.c.l.b16 %v152
    %v307 = vunpack.c.h.b16 %v152
    %v308 = vunpack.c.l.b16 %v153
    %v309 = vunpack.c.h.b16 %v153
    %v310 = vpack.c.b16 %v280, %v278
    %v311 = vpack.c.b16 %v281, %v279
    %v312 = vpack.c.b16 %v284, %v282
    %v313 = vpack.c.b16 %v285, %v283
    %v314 = vpack.c.b16 %v288, %v286
    %v315 = vpack.c.b16 %v289, %v287
    %v316 = vpack.c.b16 %v292, %v290
    %v317 = vpack.c.b16 %v293, %v291
    %v318 = vpack.c.b16 %v296, %v294
    %v319 = vpack.c.b16 %v297, %v295
    %v320 = vpack.c.b16 %v300, %v298
    %v321 = vpack.c.b16 %v301, %v299
    %v322 = vpack.c.b16 %v304, %v302
    %v323 = vpack.c.b16 %v305, %v303
    %v324 = vpack.c.b16 %v308, %v306
    %v325 = vpack.c.b16 %v309, %v307
    %342 = vmatprep.subr.bf16.mxu0 %v311
    %343 = vmatpush1.bf16.msra.mxu0 %v310
    %344 = vmatprep.subr.bf16.mxu0 %v313
    %345 = vmatpush1.bf16.msra.mxu0 %v312
    %346 = vmatprep.subr.bf16.mxu0 %v315
    %347 = vmatpush1.bf16.msra.mxu0 %v314
    %348 = vmatprep.subr.bf16.mxu0 %v317
    %349 = vmatpush1.bf16.msra.mxu0 %v316
    %350 = vmatprep.subr.bf16.mxu0 %v319
    %351 = vmatpush1.bf16.msra.mxu0 %v318
    %352 = vmatprep.subr.bf16.mxu0 %v321
    %353 = vmatpush1.bf16.msra.mxu0 %v320
    %354 = vmatprep.subr.bf16.mxu0 %v323
    %355 = vmatpush1.bf16.msra.mxu0 %v322
    %356 = vmatprep.subr.bf16.mxu0 %v325
    %357 = vmatpush1.bf16.msra.mxu0 %v324
    %358 = vmatprep.subr.bf16.mxu0 0
    %359 = vmatpush1.bf16.msra.mxu0 0
    %360 = vmatprep.subr.bf16.mxu0 0
    %361 = vmatpush1.bf16.msra.mxu0 0
    %362 = vmatprep.subr.bf16.mxu0 0
    %363 = vmatpush1.bf16.msra.mxu0 0
    %364 = vmatprep.subr.bf16.mxu0 0
    %365 = vmatpush1.bf16.msra.mxu0 0
    %366 = vmatprep.subr.bf16.mxu0 0
    %367 = vmatpush1.bf16.msra.mxu0 0
    %368 = vmatprep.subr.bf16.mxu0 0
    %369 = vmatpush1.bf16.msra.mxu0 0
    %370 = vmatprep.subr.bf16.mxu0 0
    %371 = vmatpush1.bf16.msra.mxu0 0
    %372 = vmatprep.subr.bf16.mxu0 0
    %373 = vmatpush1.bf16.msra.mxu0 0
    %374 = vmatprep.mubr.bf16.mxu0 0
    %375 = vmatmul.mubr.bf16.gmra.mrb[0].mxu0 %v230
    %v376 = vpop.f32.mrb[0].mxu0
    %v377 = vadd.f32 %v159, %v376
    %v378 = vpop.f32.mrb[0].mxu0
    %v379 = vadd.f32 %v163, %v378
    %v380 = vpop.f32.mrb[0].mxu0
    %v381 = vadd.f32 %v159, %v380
    %v382 = vpop.f32.mrb[0].mxu0
    %v383 = vadd.f32 %v163, %v382
    %384 = vmatprep.mubr.bf16.mxu0 0
    %385 = vmatmul.mubr.bf16.gmra.mrb[0].mxu0 %v231
    %v386 = vpop.f32.mrb[0].mxu0
    %v387 = vadd.f32 %v159, %v386
    %v388 = vpop.f32.mrb[0].mxu0
    %v389 = vadd.f32 %v163, %v388
    %v390 = vpop.f32.mrb[0].mxu0
    %v391 = vadd.f32 %v159, %v390
    %v392 = vpop.f32.mrb[0].mxu0
    %v393 = vadd.f32 %v163, %v392
    %394 = vmatprep.mubr.bf16.mxu0 0
    %395 = vmatmul.mubr.bf16.gmra.mrb[0].mxu0 %v232
    %v396 = vpop.f32.mrb[0].mxu0
    %v397 = vadd.f32 %v159, %v396
    %v398 = vpop.f32.mrb[0].mxu0
    %v399 = vadd.f32 %v163, %v398
    %v400 = vpop.f32.mrb[0].mxu0
    %v401 = vadd.f32 %v159, %v400
    %v402 = vpop.f32.mrb[0].mxu0
    %v403 = vadd.f32 %v163, %v402
    %404 = vmatprep.mubr.bf16.mxu0 0
    %405 = vmatmul.mubr.bf16.gmra.mrb[0].mxu0 %v233
    %v406 = vpop.f32.mrb[0].mxu0
    %v407 = vadd.f32 %v159, %v406
    %v408 = vpop.f32.mrb[0].mxu0
    %v409 = vadd.f32 %v163, %v408
    %v410 = vpop.f32.mrb[0].mxu0
    %v411 = vadd.f32 %v159, %v410
    %v412 = vpop.f32.mrb[0].mxu0
    %v413 = vadd.f32 %v163, %v412
    %414 = vmatprep.mubr.bf16.mxu0 0
    %415 = vmatmul.mubr.bf16.gmra.mrb[0].mxu0 %v234
    %v416 = vpop.f32.mrb[0].mxu0
    %v417 = vadd.f32 %v159, %v416
    %v418 = vpop.f32.mrb[0].mxu0
    %v419 = vadd.f32 %v163, %v418
    %v420 = vpop.f32.mrb[0].mxu0
    %v421 = vadd.f32 %v159, %v420
    %v422 = vpop.f32.mrb[0].mxu0
    %v423 = vadd.f32 %v163, %v422
    %424 = vmatprep.mubr.bf16.mxu0 0
    %425 = vmatmul.mubr.bf16.gmra.mrb[0].mxu0 %v235
    %v426 = vpop.f32.mrb[0].mxu0
    %v427 = vadd.f32 %v159, %v426
    %v428 = vpop.f32.mrb[0].mxu0
    %v429 = vadd.f32 %v163, %v428
    %v430 = vpop.f32.mrb[0].mxu0
    %v431 = vadd.f32 %v159, %v430
    %v432 = vpop.f32.mrb[0].mxu0
    %v433 = vadd.f32 %v163, %v432
    %434 = vmatprep.mubr.bf16.mxu0 0
    %435 = vmatmul.mubr.bf16.gmra.mrb[0].mxu0 %v236
    %v436 = vpop.f32.mrb[0].mxu0
    %v437 = vadd.f32 %v159, %v436
    %v438 = vpop.f32.mrb[0].mxu0
    %v439 = vadd.f32 %v163, %v438
    %v440 = vpop.f32.mrb[0].mxu0
    %v441 = vadd.f32 %v159, %v440
    %v442 = vpop.f32.mrb[0].mxu0
    %v443 = vadd.f32 %v163, %v442
    %444 = vmatprep.mubr.bf16.mxu0 0
    %445 = vmatmul.mubr.bf16.gmra.mrb[0].mxu0 %v237
    %v446 = vpop.f32.mrb[0].mxu0
    %v447 = vadd.f32 %v159, %v446
    %v448 = vpop.f32.mrb[0].mxu0
    %v449 = vadd.f32 %v163, %v448
    %v450 = vpop.f32.mrb[0].mxu0
    %v451 = vadd.f32 %v159, %v450
    %v452 = vpop.f32.mrb[0].mxu0
    %v453 = vadd.f32 %v163, %v452
    %454 = vmatprep.mubr.bf16.mxu0 0
    %455 = vmatmul.mubr.bf16.gmra.mrb[0].mxu0 %v238
    %v456 = vpop.f32.mrb[0].mxu0
    %v457 = vadd.f32 %v159, %v456
    %v458 = vpop.f32.mrb[0].mxu0
    %v459 = vadd.f32 %v163, %v458
    %v460 = vpop.f32.mrb[0].mxu0
    %v461 = vadd.f32 %v159, %v460
    %v462 = vpop.f32.mrb[0].mxu0
    %v463 = vadd.f32 %v163, %v462
    %464 = vmatprep.mubr.bf16.mxu0 0
    %465 = vmatmul.mubr.bf16.gmra.mrb[0].mxu0 %v239
    %v466 = vpop.f32.mrb[0].mxu0
    %v467 = vadd.f32 %v159, %v466
    %v468 = vpop.f32.mrb[0].mxu0
    %v469 = vadd.f32 %v163, %v468
    %v470 = vpop.f32.mrb[0].mxu0
    %v471 = vadd.f32 %v159, %v470
    %v472 = vpop.f32.mrb[0].mxu0
    %v473 = vadd.f32 %v163, %v472
    %474 = vmatprep.mubr.bf16.mxu0 0
    %475 = vmatmul.mubr.bf16.gmra.mrb[0].mxu0 %v240
    %v476 = vpop.f32.mrb[0].mxu0
    %v477 = vadd.f32 %v159, %v476
    %v478 = vpop.f32.mrb[0].mxu0
    %v479 = vadd.f32 %v163, %v478
    %v480 = vpop.f32.mrb[0].mxu0
    %v481 = vadd.f32 %v159, %v480
    %v482 = vpop.f32.mrb[0].mxu0
    %v483 = vadd.f32 %v163, %v482
    %484 = vmatprep.mubr.bf16.mxu0 0
    %485 = vmatmul.mubr.bf16.gmra.mrb[0].mxu0 %v241
    %v486 = vpop.f32.mrb[0].mxu0
    %v487 = vadd.f32 %v159, %v486
    %v488 = vpop.f32.mrb[0].mxu0
    %v489 = vadd.f32 %v163, %v488
    %v490 = vpop.f32.mrb[0].mxu0
    %v491 = vadd.f32 %v159, %v490
    %v492 = vpop.f32.mrb[0].mxu0
    %v493 = vadd.f32 %v163, %v492
    %494 = vmatprep.mubr.bf16.mxu0 0
    %495 = vmatmul.mubr.bf16.gmra.mrb[0].mxu0 %v242
    %v496 = vpop.f32.mrb[0].mxu0
    %v497 = vadd.f32 %v159, %v496
    %v498 = vpop.f32.mrb[0].mxu0
    %v499 = vadd.f32 %v163, %v498
    %v500 = vpop.f32.mrb[0].mxu0
    %v501 = vadd.f32 %v159, %v500
    %v502 = vpop.f32.mrb[0].mxu0
    %v503 = vadd.f32 %v163, %v502
    %504 = vmatprep.mubr.bf16.mxu0 0
    %505 = vmatmul.mubr.bf16.gmra.mrb[0].mxu0 %v243
    %v506 = vpop.f32.mrb[0].mxu0
    %v507 = vadd.f32 %v159, %v506
    %v508 = vpop.f32.mrb[0].mxu0
    %v509 = vadd.f32 %v163, %v508
    %v510 = vpop.f32.mrb[0].mxu0
    %v511 = vadd.f32 %v159, %v510
    %v512 = vpop.f32.mrb[0].mxu0
    %v513 = vadd.f32 %v163, %v512
    %514 = vmatprep.mubr.bf16.mxu0 0
    %515 = vmatmul.mubr.bf16.gmra.mrb[0].mxu0 %v244
    %v516 = vpop.f32.mrb[0].mxu0
    %v517 = vadd.f32 %v159, %v516
    %v518 = vpop.f32.mrb[0].mxu0
    %v519 = vadd.f32 %v163, %v518
    %v520 = vpop.f32.mrb[0].mxu0
    %v521 = vadd.f32 %v159, %v520
    %v522 = vpop.f32.mrb[0].mxu0
    %v523 = vadd.f32 %v163, %v522
    %524 = vmatprep.mubr.bf16.mxu0 0
    %525 = vmatmul.mubr.bf16.gmra.mrb[0].mxu0 %v245
    %v526 = vpop.f32.mrb[0].mxu0
    %v527 = vadd.f32 %v159, %v526
    %v528 = vpop.f32.mrb[0].mxu0
    %v529 = vadd.f32 %v163, %v528
    %v530 = vpop.f32.mrb[0].mxu0
    %v531 = vadd.f32 %v159, %v530
    %v532 = vpop.f32.mrb[0].mxu0
    %v533 = vadd.f32 %v163, %v532
    %534 = vdwg.mxu0
    %v535 = vmax.f32 %v377, 0.0
    %v536 = vmax.f32 %v379, 0.0
    %v537 = vmax.f32 %v381, 0.0
    %v538 = vmax.f32 %v383, 0.0
    %v539 = vmax.f32 %v387, 0.0
    %v540 = vmax.f32 %v389, 0.0
    %v541 = vmax.f32 %v391, 0.0
    %v542 = vmax.f32 %v393, 0.0
    %v543 = vmax.f32 %v397, 0.0
    %v544 = vmax.f32 %v399, 0.0
    %v545 = vmax.f32 %v401, 0.0
    %v546 = vmax.f32 %v403, 0.0
    %v547 = vmax.f32 %v407, 0.0
    %v548 = vmax.f32 %v409, 0.0
    %v549 = vmax.f32 %v411, 0.0
    %v550 = vmax.f32 %v413, 0.0
    %v551 = vmax.f32 %v417, 0.0
    %v552 = vmax.f32 %v419, 0.0
    %v553 = vmax.f32 %v421, 0.0
    %v554 = vmax.f32 %v423, 0.0
    %v555 = vmax.f32 %v427, 0.0
    %v556 = vmax.f32 %v429, 0.0
    %v557 = vmax.f32 %v431, 0.0
    %v558 = vmax.f32 %v433, 0.0
    %v559 = vmax.f32 %v437, 0.0
    %v560 = vmax.f32 %v439, 0.0
    %v561 = vmax.f32 %v441, 0.0
    %v562 = vmax.f32 %v443, 0.0
    %v563 = vmax.f32 %v447, 0.0
    %v564 = vmax.f32 %v449, 0.0
    %v565 = vmax.f32 %v451, 0.0
    %v566 = vmax.f32 %v453, 0.0
    %v567 = vmax.f32 %v457, 0.0
    %v568 = vmax.f32 %v459, 0.0
    %v569 = vmax.f32 %v461, 0.0
    %v570 = vmax.f32 %v463, 0.0
    %v571 = vmax.f32 %v467, 0.0
    %v572 = vmax.f32 %v469, 0.0
    %v573 = vmax.f32 %v471, 0.0
    %v574 = vmax.f32 %v473, 0.0
    %v575 = vmax.f32 %v477, 0.0
    %v576 = vmax.f32 %v479, 0.0
    %v577 = vmax.f32 %v481, 0.0
    %v578 = vmax.f32 %v483, 0.0
    %v579 = vmax.f32 %v487, 0.0
    %v580 = vmax.f32 %v489, 0.0
    %v581 = vmax.f32 %v491, 0.0
    %v582 = vmax.f32 %v493, 0.0
    %v583 = vmax.f32 %v497, 0.0
    %v584 = vmax.f32 %v499, 0.0
    %v585 = vmax.f32 %v501, 0.0
    %v586 = vmax.f32 %v503, 0.0
    %v587 = vmax.f32 %v507, 0.0
    %v588 = vmax.f32 %v509, 0.0
    %v589 = vmax.f32 %v511, 0.0
    %v590 = vmax.f32 %v513, 0.0
    %v591 = vmax.f32 %v517, 0.0
    %v592 = vmax.f32 %v519, 0.0
    %v593 = vmax.f32 %v521, 0.0
    %v594 = vmax.f32 %v523, 0.0
    %v595 = vmax.f32 %v527, 0.0
    %v596 = vmax.f32 %v529, 0.0
    %v597 = vmax.f32 %v531, 0.0
    %v598 = vmax.f32 %v533, 0.0
    %v599 = vld [vmem:[#allocation8] sm:$0xff]
    %v600 = vld [vmem:[#allocation8 + $0x8] sm:$0xff]
    %v601 = vld [vmem:[#allocation8 + $0x10] sm:$0xff]
    %v602 = vld [vmem:[#allocation8 + $0x18] sm:$0xff]
    %v603 = vld [vmem:[#allocation8 + $0x20] sm:$0xff]
    %v604 = vld [vmem:[#allocation8 + $0x28] sm:$0xff]
    %v605 = vld [vmem:[#allocation8 + $0x30] sm:$0xff]
    %v606 = vld [vmem:[#allocation8 + $0x38] sm:$0xff]
    %v607 = vld [vmem:[#allocation8 + $0x40] sm:$0xff]
    %v608 = vld [vmem:[#allocation8 + $0x48] sm:$0xff]
    %v609 = vld [vmem:[#allocation8 + $0x50] sm:$0xff]
    %v610 = vld [vmem:[#allocation8 + $0x58] sm:$0xff]
    %v611 = vld [vmem:[#allocation8 + $0x60] sm:$0xff]
    %v612 = vld [vmem:[#allocation8 + $0x68] sm:$0xff]
    %v613 = vld [vmem:[#allocation8 + $0x70] sm:$0xff]
    %v614 = vld [vmem:[#allocation8 + $0x78] sm:$0xff]
    %v615 = vld [vmem:[#allocation8 + $0x80] sm:$0xff]
    %v616 = vld [vmem:[#allocation8 + $0x88] sm:$0xff]
    %v617 = vld [vmem:[#allocation8 + $0x90] sm:$0xff]
    %v618 = vld [vmem:[#allocation8 + $0x98] sm:$0xff]
    %v619 = vld [vmem:[#allocation8 + $0xa0] sm:$0xff]
    %v620 = vld [vmem:[#allocation8 + $0xa8] sm:$0xff]
    %v621 = vld [vmem:[#allocation8 + $0xb0] sm:$0xff]
    %v622 = vld [vmem:[#allocation8 + $0xb8] sm:$0xff]
    %v623 = vld [vmem:[#allocation8 + $0xc0] sm:$0xff]
    %v624 = vld [vmem:[#allocation8 + $0xc8] sm:$0xff]
    %v625 = vld [vmem:[#allocation8 + $0xd0] sm:$0xff]
    %v626 = vld [vmem:[#allocation8 + $0xd8] sm:$0xff]
    %v627 = vld [vmem:[#allocation8 + $0xe0] sm:$0xff]
    %v628 = vld [vmem:[#allocation8 + $0xe8] sm:$0xff]
    %v629 = vld [vmem:[#allocation8 + $0xf0] sm:$0xff]
    %v630 = vld [vmem:[#allocation8 + $0xf8] sm:$0xff]
    %v631 = vpack.c.bf16 %v537, %v535
    %v632 = vpack.c.bf16 %v538, %v536
    %v633 = vpack.c.bf16 %v541, %v539
    %v634 = vpack.c.bf16 %v542, %v540
    %v635 = vpack.c.bf16 %v545, %v543
    %v636 = vpack.c.bf16 %v546, %v544
    %v637 = vpack.c.bf16 %v549, %v547
    %v638 = vpack.c.bf16 %v550, %v548
    %v639 = vpack.c.bf16 %v553, %v551
    %v640 = vpack.c.bf16 %v554, %v552
    %v641 = vpack.c.bf16 %v557, %v555
    %v642 = vpack.c.bf16 %v558, %v556
    %v643 = vpack.c.bf16 %v561, %v559
    %v644 = vpack.c.bf16 %v562, %v560
    %v645 = vpack.c.bf16 %v565, %v563
    %v646 = vpack.c.bf16 %v566, %v564
    %v647 = vpack.c.bf16 %v569, %v567
    %v648 = vpack.c.bf16 %v570, %v568
    %v649 = vpack.c.bf16 %v573, %v571
    %v650 = vpack.c.bf16 %v574, %v572
    %v651 = vpack.c.bf16 %v577, %v575
    %v652 = vpack.c.bf16 %v578, %v576
    %v653 = vpack.c.bf16 %v581, %v579
    %v654 = vpack.c.bf16 %v582, %v580
    %v655 = vpack.c.bf16 %v585, %v583
    %v656 = vpack.c.bf16 %v586, %v584
    %v657 = vpack.c.bf16 %v589, %v587
    %v658 = vpack.c.bf16 %v590, %v588
    %v659 = vpack.c.bf16 %v593, %v591
    %v660 = vpack.c.bf16 %v594, %v592
    %v661 = vpack.c.bf16 %v597, %v595
    %v662 = vpack.c.bf16 %v598, %v596
    %v663 = vld [vmem:[#allocation7] sm:$0xf]
    %v664 = vld [vmem:[#allocation7 + $0x4] sm:$0xf]
    %v665 = vld [vmem:[#allocation7 + $0x8] sm:$0xf]
    %v666 = vld [vmem:[#allocation7 + $0xc] sm:$0xf]
    %v667 = vld [vmem:[#allocation7 + $0x10] sm:$0xf]
    %v668 = vld [vmem:[#allocation7 + $0x14] sm:$0xf]
    %v669 = vld [vmem:[#allocation7 + $0x18] sm:$0xf]
    %v670 = vld [vmem:[#allocation7 + $0x1c] sm:$0xf]
    %v671 = vld [vmem:[#allocation7 + $0x20] sm:$0xf]
    %v672 = vld [vmem:[#allocation7 + $0x24] sm:$0xf]
    %v673 = vld [vmem:[#allocation7 + $0x28] sm:$0xf]
    %v674 = vld [vmem:[#allocation7 + $0x2c] sm:$0xf]
    %v675 = vld [vmem:[#allocation7 + $0x30] sm:$0xf]
    %v676 = vld [vmem:[#allocation7 + $0x34] sm:$0xf]
    %v677 = vld [vmem:[#allocation7 + $0x38] sm:$0xf]
    %v678 = vld [vmem:[#allocation7 + $0x3c] sm:$0xf]
    %v679 = vld [vmem:[#allocation7 + $0x40] sm:$0xf]
    %v680 = vld [vmem:[#allocation7 + $0x44] sm:$0xf]
    %v681 = vld [vmem:[#allocation7 + $0x48] sm:$0xf]
    %v682 = vld [vmem:[#allocation7 + $0x4c] sm:$0xf]
    %v683 = vld [vmem:[#allocation7 + $0x50] sm:$0xf]
    %v684 = vld [vmem:[#allocation7 + $0x54] sm:$0xf]
    %v685 = vld [vmem:[#allocation7 + $0x58] sm:$0xf]
    %v686 = vld [vmem:[#allocation7 + $0x5c] sm:$0xf]
    %v687 = vld [vmem:[#allocation7 + $0x60] sm:$0xf]
    %v688 = vld [vmem:[#allocation7 + $0x64] sm:$0xf]
    %v689 = vld [vmem:[#allocation7 + $0x68] sm:$0xf]
    %v690 = vld [vmem:[#allocation7 + $0x6c] sm:$0xf]
    %v691 = vld [vmem:[#allocation7 + $0x70] sm:$0xf]
    %v692 = vld [vmem:[#allocation7 + $0x74] sm:$0xf]
    %v693 = vld [vmem:[#allocation7 + $0x78] sm:$0xf]
    %v694 = vld [vmem:[#allocation7 + $0x7c] sm:$0xf]
    %v727 = vunpack.c.l.b16 %v663
    %v728 = vunpack.c.l.b16 %v664
    %v729 = vunpack.c.l.b16 %v665
    %v730 = vunpack.c.l.b16 %v666
    %v731 = vunpack.c.l.b16 %v667
    %v732 = vunpack.c.l.b16 %v668
    %v733 = vunpack.c.l.b16 %v669
    %v734 = vunpack.c.l.b16 %v670
    %v735 = vunpack.c.l.b16 %v671
    %v736 = vunpack.c.l.b16 %v672
    %v737 = vunpack.c.l.b16 %v673
    %v738 = vunpack.c.l.b16 %v674
    %v739 = vunpack.c.l.b16 %v675
    %v740 = vunpack.c.l.b16 %v676
    %v741 = vunpack.c.l.b16 %v677
    %v742 = vunpack.c.l.b16 %v678
    %v743 = vunpack.c.l.b16 %v679
    %v744 = vunpack.c.l.b16 %v680
    %v745 = vunpack.c.l.b16 %v681
    %v746 = vunpack.c.l.b16 %v682
    %v747 = vunpack.c.l.b16 %v683
    %v748 = vunpack.c.l.b16 %v684
    %v749 = vunpack.c.l.b16 %v685
    %v750 = vunpack.c.l.b16 %v686
    %v751 = vunpack.c.l.b16 %v687
    %v752 = vunpack.c.l.b16 %v688
    %v753 = vunpack.c.l.b16 %v689
    %v754 = vunpack.c.l.b16 %v690
    %v755 = vunpack.c.l.b16 %v691
    %v756 = vunpack.c.l.b16 %v692
    %v757 = vunpack.c.l.b16 %v693
    %v758 = vunpack.c.l.b16 %v694
    %v759 = vpack.c.b16 %v728, %v727
    %v760 = vpack.c.b16 %v730, %v729
    %v761 = vpack.c.b16 %v732, %v731
    %v762 = vpack.c.b16 %v734, %v733
    %v763 = vpack.c.b16 %v736, %v735
    %v764 = vpack.c.b16 %v738, %v737
    %v765 = vpack.c.b16 %v740, %v739
    %v766 = vpack.c.b16 %v742, %v741
    %v767 = vpack.c.b16 %v744, %v743
    %v768 = vpack.c.b16 %v746, %v745
    %v769 = vpack.c.b16 %v748, %v747
    %v770 = vpack.c.b16 %v750, %v749
    %v771 = vpack.c.b16 %v752, %v751
    %v772 = vpack.c.b16 %v754, %v753
    %v773 = vpack.c.b16 %v756, %v755
    %v774 = vpack.c.b16 %v758, %v757
    %791 = vmatprep.subr.bf16.mxu0 0
    %792 = vmatpush1.bf16.msra.mxu0 %v759
    %793 = vmatprep.subr.bf16.mxu0 0
    %794 = vmatpush1.bf16.msra.mxu0 %v760
    %795 = vmatprep.subr.bf16.mxu0 0
    %796 = vmatpush1.bf16.msra.mxu0 %v761
    %797 = vmatprep.subr.bf16.mxu0 0
    %798 = vmatpush1.bf16.msra.mxu0 %v762
    %799 = vmatprep.subr.bf16.mxu0 0
    %800 = vmatpush1.bf16.msra.mxu0 %v763
    %801 = vmatprep.subr.bf16.mxu0 0
    %802 = vmatpush1.bf16.msra.mxu0 %v764
    %803 = vmatprep.subr.bf16.mxu0 0
    %804 = vmatpush1.bf16.msra.mxu0 %v765
    %805 = vmatprep.subr.bf16.mxu0 0
    %806 = vmatpush1.bf16.msra.mxu0 %v766
    %807 = vmatprep.subr.bf16.mxu0 0
    %808 = vmatpush1.bf16.msra.mxu0 %v767
    %809 = vmatprep.subr.bf16.mxu0 0
    %810 = vmatpush1.bf16.msra.mxu0 %v768
    %811 = vmatprep.subr.bf16.mxu0 0
    %812 = vmatpush1.bf16.msra.mxu0 %v769
    %813 = vmatprep.subr.bf16.mxu0 0
    %814 = vmatpush1.bf16.msra.mxu0 %v770
    %815 = vmatprep.subr.bf16.mxu0 0
    %816 = vmatpush1.bf16.msra.mxu0 %v771
    %817 = vmatprep.subr.bf16.mxu0 0
    %818 = vmatpush1.bf16.msra.mxu0 %v772
    %819 = vmatprep.subr.bf16.mxu0 0
    %820 = vmatpush1.bf16.msra.mxu0 %v773
    %821 = vmatprep.subr.bf16.mxu0 0
    %822 = vmatpush1.bf16.msra.mxu0 %v774
    %823 = vmatprep.mubr.bf16.mxu0 %v632
    %824 = vmatmul.mubr.bf16.gmra.mrb[0].mxu0 %v631
    %v825 = vpop.f32.mrb[0].mxu0
    %v826 = vadd.f32 0.0, %v825
    %v827 = vpop.f32.mrb[0].mxu0
    %v828 = vpop.f32.mrb[0].mxu0
    %v829 = vadd.f32 0.0, %v828
    %v830 = vpop.f32.mrb[0].mxu0
    %831 = vmatprep.mubr.bf16.mxu0 %v634
    %832 = vmatmul.mubr.bf16.gmra.mrb[0].mxu0 %v633
    %v833 = vpop.f32.mrb[0].mxu0
    %v834 = vadd.f32 0.0, %v833
    %v835 = vpop.f32.mrb[0].mxu0
    %v836 = vpop.f32.mrb[0].mxu0
    %v837 = vadd.f32 0.0, %v836
    %v838 = vpop.f32.mrb[0].mxu0
    %839 = vmatprep.mubr.bf16.mxu0 %v636
    %840 = vmatmul.mubr.bf16.gmra.mrb[0].mxu0 %v635
    %v841 = vpop.f32.mrb[0].mxu0
    %v842 = vadd.f32 0.0, %v841
    %v843 = vpop.f32.mrb[0].mxu0
    %v844 = vpop.f32.mrb[0].mxu0
    %v845 = vadd.f32 0.0, %v844
    %v846 = vpop.f32.mrb[0].mxu0
    %847 = vmatprep.mubr.bf16.mxu0 %v638
    %848 = vmatmul.mubr.bf16.gmra.mrb[0].mxu0 %v637
    %v849 = vpop.f32.mrb[0].mxu0
    %v850 = vadd.f32 0.0, %v849
    %v851 = vpop.f32.mrb[0].mxu0
    %v852 = vpop.f32.mrb[0].mxu0
    %v853 = vadd.f32 0.0, %v852
    %v854 = vpop.f32.mrb[0].mxu0
    %855 = vmatprep.mubr.bf16.mxu0 %v640
    %856 = vmatmul.mubr.bf16.gmra.mrb[0].mxu0 %v639
    %v857 = vpop.f32.mrb[0].mxu0
    %v858 = vadd.f32 0.0, %v857
    %v859 = vpop.f32.mrb[0].mxu0
    %v860 = vpop.f32.mrb[0].mxu0
    %v861 = vadd.f32 0.0, %v860
    %v862 = vpop.f32.mrb[0].mxu0
    %863 = vmatprep.mubr.bf16.mxu0 %v642
    %864 = vmatmul.mubr.bf16.gmra.mrb[0].mxu0 %v641
    %v865 = vpop.f32.mrb[0].mxu0
    %v866 = vadd.f32 0.0, %v865
    %v867 = vpop.f32.mrb[0].mxu0
    %v868 = vpop.f32.mrb[0].mxu0
    %v869 = vadd.f32 0.0, %v868
    %v870 = vpop.f32.mrb[0].mxu0
    %871 = vmatprep.mubr.bf16.mxu0 %v644
    %872 = vmatmul.mubr.bf16.gmra.mrb[0].mxu0 %v643
    %v873 = vpop.f32.mrb[0].mxu0
    %v874 = vadd.f32 0.0, %v873
    %v875 = vpop.f32.mrb[0].mxu0
    %v876 = vpop.f32.mrb[0].mxu0
    %v877 = vadd.f32 0.0, %v876
    %v878 = vpop.f32.mrb[0].mxu0
    %879 = vmatprep.mubr.bf16.mxu0 %v646
    %880 = vmatmul.mubr.bf16.gmra.mrb[0].mxu0 %v645
    %v881 = vpop.f32.mrb[0].mxu0
    %v882 = vadd.f32 0.0, %v881
    %v883 = vpop.f32.mrb[0].mxu0
    %v884 = vpop.f32.mrb[0].mxu0
    %v885 = vadd.f32 0.0, %v884
    %v886 = vpop.f32.mrb[0].mxu0
    %887 = vmatprep.mubr.bf16.mxu0 %v648
    %888 = vmatmul.mubr.bf16.gmra.mrb[0].mxu0 %v647
    %v889 = vpop.f32.mrb[0].mxu0
    %v890 = vadd.f32 0.0, %v889
    %v891 = vpop.f32.mrb[0].mxu0
    %v892 = vpop.f32.mrb[0].mxu0
    %v893 = vadd.f32 0.0, %v892
    %v894 = vpop.f32.mrb[0].mxu0
    %895 = vmatprep.mubr.bf16.mxu0 %v650
    %896 = vmatmul.mubr.bf16.gmra.mrb[0].mxu0 %v649
    %v897 = vpop.f32.mrb[0].mxu0
    %v898 = vadd.f32 0.0, %v897
    %v899 = vpop.f32.mrb[0].mxu0
    %v900 = vpop.f32.mrb[0].mxu0
    %v901 = vadd.f32 0.0, %v900
    %v902 = vpop.f32.mrb[0].mxu0
    %903 = vmatprep.mubr.bf16.mxu0 %v652
    %904 = vmatmul.mubr.bf16.gmra.mrb[0].mxu0 %v651
    %v905 = vpop.f32.mrb[0].mxu0
    %v906 = vadd.f32 0.0, %v905
    %v907 = vpop.f32.mrb[0].mxu0
    %v908 = vpop.f32.mrb[0].mxu0
    %v909 = vadd.f32 0.0, %v908
    %v910 = vpop.f32.mrb[0].mxu0
    %911 = vmatprep.mubr.bf16.mxu0 %v654
    %912 = vmatmul.mubr.bf16.gmra.mrb[0].mxu0 %v653
    %v913 = vpop.f32.mrb[0].mxu0
    %v914 = vadd.f32 0.0, %v913
    %v915 = vpop.f32.mrb[0].mxu0
    %v916 = vpop.f32.mrb[0].mxu0
    %v917 = vadd.f32 0.0, %v916
    %v918 = vpop.f32.mrb[0].mxu0
    %919 = vmatprep.mubr.bf16.mxu0 %v656
    %920 = vmatmul.mubr.bf16.gmra.mrb[0].mxu0 %v655
    %v921 = vpop.f32.mrb[0].mxu0
    %v922 = vadd.f32 0.0, %v921
    %v923 = vpop.f32.mrb[0].mxu0
    %v924 = vpop.f32.mrb[0].mxu0
    %v925 = vadd.f32 0.0, %v924
    %v926 = vpop.f32.mrb[0].mxu0
    %927 = vmatprep.mubr.bf16.mxu0 %v658
    %928 = vmatmul.mubr.bf16.gmra.mrb[0].mxu0 %v657
    %v929 = vpop.f32.mrb[0].mxu0
    %v930 = vadd.f32 0.0, %v929
    %v931 = vpop.f32.mrb[0].mxu0
    %v932 = vpop.f32.mrb[0].mxu0
    %v933 = vadd.f32 0.0, %v932
    %v934 = vpop.f32.mrb[0].mxu0
    %935 = vmatprep.mubr.bf16.mxu0 %v660
    %936 = vmatmul.mubr.bf16.gmra.mrb[0].mxu0 %v659
    %v937 = vpop.f32.mrb[0].mxu0
    %v938 = vadd.f32 0.0, %v937
    %v939 = vpop.f32.mrb[0].mxu0
    %v940 = vpop.f32.mrb[0].mxu0
    %v941 = vadd.f32 0.0, %v940
    %v942 = vpop.f32.mrb[0].mxu0
    %943 = vmatprep.mubr.bf16.mxu0 %v662
    %944 = vmatmul.mubr.bf16.gmra.mrb[0].mxu0 %v661
    %v945 = vpop.f32.mrb[0].mxu0
    %v946 = vadd.f32 0.0, %v945
    %v947 = vpop.f32.mrb[0].mxu0
    %v948 = vpop.f32.mrb[0].mxu0
    %v949 = vadd.f32 0.0, %v948
    %v950 = vpop.f32.mrb[0].mxu0
    %951 = vdwg.mxu0
    %v952 = vadd.f32 %v599, %v826
    %v953 = vadd.f32 %v600, %v829
    %v954 = vadd.f32 %v601, %v834
    %v955 = vadd.f32 %v602, %v837
    %v956 = vadd.f32 %v603, %v842
    %v957 = vadd.f32 %v604, %v845
    %v958 = vadd.f32 %v605, %v850
    %v959 = vadd.f32 %v606, %v853
    %v960 = vadd.f32 %v607, %v858
    %v961 = vadd.f32 %v608, %v861
    %v962 = vadd.f32 %v609, %v866
    %v963 = vadd.f32 %v610, %v869
    %v964 = vadd.f32 %v611, %v874
    %v965 = vadd.f32 %v612, %v877
    %v966 = vadd.f32 %v613, %v882
    %v967 = vadd.f32 %v614, %v885
    %v968 = vadd.f32 %v615, %v890
    %v969 = vadd.f32 %v616, %v893
    %v970 = vadd.f32 %v617, %v898
    %v971 = vadd.f32 %v618, %v901
    %v972 = vadd.f32 %v619, %v906
    %v973 = vadd.f32 %v620, %v909
    %v974 = vadd.f32 %v621, %v914
    %v975 = vadd.f32 %v622, %v917
    %v976 = vadd.f32 %v623, %v922
    %v977 = vadd.f32 %v624, %v925
    %v978 = vadd.f32 %v625, %v930
    %v979 = vadd.f32 %v626, %v933
    %v980 = vadd.f32 %v627, %v938
    %v981 = vadd.f32 %v628, %v941
    %v982 = vadd.f32 %v629, %v946
    %v983 = vadd.f32 %v630, %v949
    %984 = vst [vmem:[#allocation8] sm:$0xff] %v952
    %985 = vst [vmem:[#allocation8 + $0x8] sm:$0xff] %v953
    %986 = vst [vmem:[#allocation8 + $0x10] sm:$0xff] %v954
    %987 = vst [vmem:[#allocation8 + $0x18] sm:$0xff] %v955
    %988 = vst [vmem:[#allocation8 + $0x20] sm:$0xff] %v956
    %989 = vst [vmem:[#allocation8 + $0x28] sm:$0xff] %v957
    %990 = vst [vmem:[#allocation8 + $0x30] sm:$0xff] %v958
    %991 = vst [vmem:[#allocation8 + $0x38] sm:$0xff] %v959
    %992 = vst [vmem:[#allocation8 + $0x40] sm:$0xff] %v960
    %993 = vst [vmem:[#allocation8 + $0x48] sm:$0xff] %v961
    %994 = vst [vmem:[#allocation8 + $0x50] sm:$0xff] %v962
    %995 = vst [vmem:[#allocation8 + $0x58] sm:$0xff] %v963
    %996 = vst [vmem:[#allocation8 + $0x60] sm:$0xff] %v964
    %997 = vst [vmem:[#allocation8 + $0x68] sm:$0xff] %v965
    %998 = vst [vmem:[#allocation8 + $0x70] sm:$0xff] %v966
    %999 = vst [vmem:[#allocation8 + $0x78] sm:$0xff] %v967
    %1000 = vst [vmem:[#allocation8 + $0x80] sm:$0xff] %v968
    %1001 = vst [vmem:[#allocation8 + $0x88] sm:$0xff] %v969
    %1002 = vst [vmem:[#allocation8 + $0x90] sm:$0xff] %v970
    %1003 = vst [vmem:[#allocation8 + $0x98] sm:$0xff] %v971
    %1004 = vst [vmem:[#allocation8 + $0xa0] sm:$0xff] %v972
    %1005 = vst [vmem:[#allocation8 + $0xa8] sm:$0xff] %v973
    %1006 = vst [vmem:[#allocation8 + $0xb0] sm:$0xff] %v974
    %1007 = vst [vmem:[#allocation8 + $0xb8] sm:$0xff] %v975
    %1008 = vst [vmem:[#allocation8 + $0xc0] sm:$0xff] %v976
    %1009 = vst [vmem:[#allocation8 + $0xc8] sm:$0xff] %v977
    %1010 = vst [vmem:[#allocation8 + $0xd0] sm:$0xff] %v978
    %1011 = vst [vmem:[#allocation8 + $0xd8] sm:$0xff] %v979
    %1012 = vst [vmem:[#allocation8 + $0xe0] sm:$0xff] %v980
    %1013 = vst [vmem:[#allocation8 + $0xe8] sm:$0xff] %v981
    %1014 = vst [vmem:[#allocation8 + $0xf0] sm:$0xff] %v982
    %1015 = vst [vmem:[#allocation8 + $0xf8] sm:$0xff] %v983
    // Predicated region
    $region38: #{tpu_custom_call.1} parent=1 // pred_check
      _
    $region39: #{tpu_custom_call.1} parent=1 // pred_check_branch
      %1017 = sbr.rel (0) target = $region41
    $region40: #{tpu_custom_call.1} parent=1 // pred_region
      %s1019 = ssub.s32 4096, 4096
      %1020 = vsyncadd [#allocation4], %s1019
      %s1021 = sshll.u32 [#allocation8], 4
      %s1022 = int_to_ptr.vmem [resolvable:$true] %s1021
      %1027 = dma.vmem_to_hbm [thread:$0]  %s1022, 4096, %s5, [#allocation4], 128, 128, 8
    $region41: #{tpu_custom_call.1} parent=1 // pred_fallthru
      _
    // Predicated region
    $region42: #{tpu_custom_call.1} parent=1 // pred_check
      _
    $region43: #{tpu_custom_call.1} parent=1 // pred_check_branch
      %1029 = sbr.rel (0) target = $region45
    $region44: #{tpu_custom_call.1} parent=1 // pred_region
      %1030 = dma.done [#allocation4], 4096
    $region45: #{tpu_custom_call.1} parent=1 // pred_fallthru
      _
    %1031 = vsyncpa [#allocation3], 1
    %1032 = vsyncpa [#allocation6], 1
    %1033 = vsyncpa [#allocation4], 1

</llo_original>
